<compile_context>
chip_gen: v6e
topology: v6e:2x2x1
jax: 0.10.0
libtpu: 0.0.40
codegen_flags: <defaults>
</compile_context>

<pallas_src>
import functools
import numpy as np
import jax
import jax.numpy as jnp
from jax import lax
from jax.experimental import pallas as pl
from jax.experimental.pallas import tpu as pltpu

LRELU_SLOPE = 0.2            # lrelu02_kwargs
BN_EPS = 1e-6                # bn099_kwargs

VMEM_LIMIT = 32 * 1024 * 1024    # modest request; fine on v5e/v6e/v7x
MLP_ROW_CAP = 1024               # row-tile cap for plain MLP kernels
LFA_ROW_CAP = 128                # row-tile cap for the K=16 neighborhood kernel
FMA_MAX_K = 8                    # contractions <= 8 stay on the VPU (f32 FMAs)


def _round_up(n, m):
    return ((n + m - 1) // m) * m


def _tile_plan(n, cap):
    """Balanced row tiling: >=2 grid steps when possible (v7x's two cores),
    <8 rows of padding waste per tile, tiles a multiple of 8 sublanes."""
    n8 = max(_round_up(n, 8), 8)
    num_tiles = max(-(-n8 // cap), 2 if n8 >= 16 else 1)
    tn = _round_up(-(-n8 // num_tiles), 8)
    n_pad = _round_up(n8, tn)
    return tn, n_pad


def _leaky(y):
    return jnp.where(y >= 0, y, LRELU_SLOPE * y)


def _matmul(x, w):
    """Contraction <= 8: f32 VPU broadcast-FMAs (a 3-8 deep contraction uses
    <3% of the MXU and would force a bf16 cast).  Otherwise bf16 MXU feed with
    f32 accumulation (weights are already bf16; astype is then a no-op)."""
    kdim = x.shape[-1]
    if kdim <= FMA_MAX_K:
        xf = x.astype(jnp.float32)
        wf = w.astype(jnp.float32)
        acc = xf[:, 0:1] * wf[0:1, :]
        for d in range(1, kdim):
            acc = acc + xf[:, d:d + 1] * wf[d:d + 1, :]
        return acc
    return jnp.dot(x.astype(jnp.bfloat16), w.astype(jnp.bfloat16),
                   preferred_element_type=jnp.float32)


def _prep_w(w):
    # Pre-cast MXU-path weights to bf16 once; keep FMA-path weights in f32.
    return (w.astype(jnp.bfloat16) if w.shape[0] > FMA_MAX_K
            else w.astype(jnp.float32))


def _compiler_params():
    return pltpu.CompilerParams(dimension_semantics=("parallel",),
                                vmem_limit_bytes=VMEM_LIMIT)


# ----------------------------- SharedMLP kernels -----------------------------

def _mlp_kernel(x_ref, w_ref, shift_ref, o_ref, *, act):
    y = _matmul(x_ref[...], w_ref[...]) + shift_ref[...]
    if act:
        y = _leaky(y)
    o_ref[...] = y


def _mlp_res_kernel(x_ref, w_ref, shift_ref, res_ref, o_ref):
    y = _matmul(x_ref[...], w_ref[...]) + shift_ref[...] + res_ref[...]
    o_ref[...] = _leaky(y)


def shared_mlp(x, p, *, act=True, residual=None, row_cap=MLP_ROW_CAP):
    n, cin = x.shape
    w, shift = p['w'], p['shift']
    cout = w.shape[1]
    tn, n_pad = _tile_plan(n, row_cap)
    if n_pad != n:
        x = jnp.pad(x, ((0, n_pad - n), (0, 0)))
        if residual is not None:
            residual = jnp.pad(residual, ((0, n_pad - n), (0, 0)))

    nmap = lambda i: (i, 0)
    wmap = lambda i: (0, 0)
    in_specs = [pl.BlockSpec((tn, cin), nmap),
                pl.BlockSpec((cin, cout), wmap),
                pl.BlockSpec((1, cout), wmap)]
    args = [x, w, shift.reshape(1, cout)]
    if residual is not None:
        in_specs.append(pl.BlockSpec((tn, cout), nmap))
        args.append(residual)
        kernel = _mlp_res_kernel
    else:
        kernel = functools.partial(_mlp_kernel, act=act)

    w_bytes = int(w.size) * int(w.dtype.itemsize)
    bytes_acc = 4 * n_pad * (cin + cout + (cout if residual is not None else 0)) + w_bytes
    out = pl.pallas_call(
        kernel,
        out_shape=jax.ShapeDtypeStruct((n_pad, cout), jnp.float32),
        grid=(n_pad // tn,),
        in_specs=in_specs,
        out_specs=pl.BlockSpec((tn, cout), nmap),
        compiler_params=_compiler_params(),
        cost_estimate=pl.CostEstimate(flops=int(2 * n_pad * cin * cout),
                                      transcendentals=0,
                                      bytes_accessed=int(bytes_acc)),
    )(*args)
    return out[:n] if n_pad != n else out


# -------------- fused block front: [fc0 ->] (shortcut | mlp1) ----------------

def _front_kernel(x_ref, *refs, has_fc0, c_sc):
    x = x_ref[...]
    if has_fc0:
        w0_ref, b0_ref = refs[0], refs[1]
        refs = refs[2:]
        x = _matmul(x, w0_ref[...]) + b0_ref[...]        # fc0: plain Linear
    w_ref, shift_ref, o1_ref, osc_ref = refs
    y = _matmul(x, w_ref[...]) + shift_ref[...]          # [shortcut | mlp1] packed
    osc_ref[...] = y[:, :c_sc]                           # shortcut: Linear+BN, no act
    o1_ref[...] = _leaky(y[:, c_sc:])                    # mlp1: Linear+BN+LeakyReLU


def block_front(x, front_p, fc0_p=None, row_cap=MLP_ROW_CAP):
    n, cin = x.shape
    w_cat, shift_cat = front_p['w'], front_p['shift']
    c_sc = front_p['c_sc']
    c_tot = w_cat.shape[1]
    c1 = c_tot - c_sc
    tn, n_pad = _tile_plan(n, row_cap)
    if n_pad != n:
        x = jnp.pad(x, ((0, n_pad - n), (0, 0)))

    nmap = lambda i: (i, 0)
    wmap = lambda i: (0, 0)
    in_specs = [pl.BlockSpec((tn, cin), nmap)]
    args = [x]
    if fc0_p is not None:
        c0 = fc0_p['w'].shape[1]
        in_specs += [pl.BlockSpec((cin, c0), wmap), pl.BlockSpec((1, c0), wmap)]
        args += [fc0_p['w'], fc0_p['b'].reshape(1, c0)]
        cmid = c0
    else:
        cmid = cin
    in_specs += [pl.BlockSpec((cmid, c_tot), wmap), pl.BlockSpec((1, c_tot), wmap)]
    args += [w_cat, shift_cat.reshape(1, c_tot)]

    flops = 2 * n_pad * cmid * c_tot
    if fc0_p is not None:
        flops += 2 * n_pad * cin * cmid
    bytes_acc = 4 * n_pad * (cin + c_tot) + int(w_cat.size) * int(w_cat.dtype.itemsize)

    o1, osc = pl.pallas_call(
        functools.partial(_front_kernel, has_fc0=fc0_p is not None, c_sc=c_sc),
        out_shape=(jax.ShapeDtypeStruct((n_pad, c1), jnp.float32),
                   jax.ShapeDtypeStruct((n_pad, c_sc), jnp.float32)),
        grid=(n_pad // tn,),
        in_specs=in_specs,
        out_specs=(pl.BlockSpec((tn, c1), nmap), pl.BlockSpec((tn, c_sc), nmap)),
        compiler_params=_compiler_params(),
        cost_estimate=pl.CostEstimate(flops=int(flops), transcendentals=0,
                                      bytes_accessed=int(bytes_acc)),
    )(*args)
    if n_pad != n:
        o1, osc = o1[:n], osc[:n]
    return o1, osc


# ----- LocalFeatureAggregation (locSE + attention + post MLP, one kernel) -----

def _lfa_kernel(pos_ref, rel_ref, xj_ref,
                w_ci_ref, w_rel_ref, shift_e_ref,
                w_att_ref, w_post_ref, shift_p_ref,
                o_ref, *, k):
    tn = pos_ref.shape[0]
    cx = xj_ref.shape[1]
    tk = tn * k
    ch = 2 * cx

    # locSE encoder: enc = pos_i@(Wei+Wej) + [diff|dist]@W_rel, BN-scale folded
    # into the weights, everything as f32 VPU FMAs (contractions 3 and 4).
    enc_i = _matmul(pos_ref[...], w_ci_ref[...])                   # (tn, cx)
    enc_d = _matmul(rel_ref[...], w_rel_ref[...])                  # (tk, cx)
    enc = (enc_d.reshape(tn, k, cx) + enc_i[:, None, :]
           + shift_e_ref[...].reshape(1, 1, cx))
    enc = _leaky(enc)                                              # (tn, k, cx)

    # local_features = [x_j | enc]
    xj = xj_ref[...].astype(jnp.float32).reshape(tn, k, cx)
    local = jnp.concatenate([xj, enc], axis=-1)                    # (tn, k, 2cx)

    # attention scores (Linear, no bias/norm/act), softmax over the K neighbors
    att = _matmul(local.reshape(tk, ch), w_att_ref[...]).reshape(tn, k, ch)
    att = att - jnp.max(att, axis=1, keepdims=True)
    # TODO(synk): on v6e/v7x the exp could run in bf16 (keep f32 on v5e).
    p = jnp.exp(att)
    s = p * pl.reciprocal(jnp.sum(p, axis=1, keepdims=True), approx=True)

    # aggr='add' of att_scores * local_features, then fused mlp_post_attention
    agg = jnp.sum(s * local, axis=1)                               # (tn, 2cx)
    y = _matmul(agg, w_post_ref[...]) + shift_p_ref[...]
    o_ref[...] = _leaky(y)                                         # (tn, 2cx)


def apply_lfa(p, nbr, x, pos, row_cap=LFA_ROW_CAP):
    n, k = nbr.shape
    cx = x.shape[1]
    ch = 2 * cx
    # Neighbor features gathered in bf16 (halves the dominant HBM stream);
    # relative geometry stays f32 (diff computed before any bf16 rounding).
    # TODO(synk): replace the XLA gathers with an in-kernel DMA gather
    # (PrefetchScalarGridSpec + pl.ANY source) to avoid the K-fold HBM blow-up.
    xj = x.astype(jnp.bfloat16)[nbr]                               # (n, k, cx)
    diff = pos[nbr] - pos[:, None, :]                              # (n, k, 3) f32
    dist = jnp.sqrt(jnp.sum(diff * diff, axis=-1, keepdims=True))  # (n, k, 1)
    rel = jnp.concatenate([diff, dist], axis=-1)                   # (n, k, 4)

    tn, n_pad = _tile_plan(n, row_cap)
    if n_pad != n:
        pad = n_pad - n
        pos_c = jnp.pad(pos, ((0, pad), (0, 0)))
        xj = jnp.pad(xj, ((0, pad), (0, 0), (0, 0)))
        rel = jnp.pad(rel, ((0, pad), (0, 0), (0, 0)))
    else:
        pos_c = pos
    xj = xj.reshape(n_pad * k, cx)
    rel = rel.reshape(n_pad * k, 4)

    nmap = lambda i: (i, 0)
    wmap = lambda i: (0, 0)
    flops = (2 * n_pad * k * ch * ch + 2 * n_pad * ch * ch
             + 2 * n_pad * k * 4 * cx + 2 * n_pad * 3 * cx + 8 * n_pad * k * ch)
    bytes_acc = (n_pad * (3 * 4 + k * 4 * 4 + k * cx * 2 + ch * 4)
                 + 4 * ch * ch + 8 * cx)
    out = pl.pallas_call(
        functools.partial(_lfa_kernel, k=k),
        out_shape=jax.ShapeDtypeStruct((n_pad, ch), jnp.float32),
        grid=(n_pad // tn,),
        in_specs=[
            pl.BlockSpec((tn, 3), nmap),
            pl.BlockSpec((tn * k, 4), nmap),
            pl.BlockSpec((tn * k, cx), nmap),
            pl.BlockSpec((3, cx), wmap),
            pl.BlockSpec((4, cx), wmap),
            pl.BlockSpec((1, cx), wmap),
            pl.BlockSpec((ch, ch), wmap),
            pl.BlockSpec((ch, ch), wmap),
            pl.BlockSpec((1, ch), wmap),
        ],
        out_specs=pl.BlockSpec((tn, ch), nmap),
        compiler_params=_compiler_params(),
        cost_estimate=pl.CostEstimate(flops=int(flops),
                                      transcendentals=int(n_pad * k * ch),
                                      bytes_accessed=int(bytes_acc)),
    )(pos_c, rel, xj,
      p['w_ci'], p['w_rel'], p['shift_e'].reshape(1, cx),
      p['w_att'], p['w_post'], p['shift_p'].reshape(1, ch))
    return out[:n] if n_pad != n else out


# ------------------------------ graph utilities ------------------------------

def knn_graph_jax(pos, batch, k, row_block=1024):
    """knn_graph(pos, k, batch, loop=True): K nearest neighbors (incl. self)
    within the same graph.  Processed in row blocks so only a (row_block, N)
    distance slab is live at a time, not the full (N, N) matrix.
    TODO(synk): replace with a Pallas running-top-K kernel for very large N."""
    n = pos.shape[0]
    row_block = min(row_block, _round_up(n, 8))
    n_pad = _round_up(n, row_block)
    pos_p = jnp.pad(pos, ((0, n_pad - n), (0, 0)))
    batch_p = jnp.pad(batch, (0, n_pad - n), constant_values=-1)
    pos_sq = jnp.sum(pos * pos, axis=-1)

    def block_fn(start):
        pb = lax.dynamic_slice(pos_p, (start, 0), (row_block, 3))
        bb = lax.dynamic_slice(batch_p, (start,), (row_block,))
        d2 = (jnp.sum(pb * pb, axis=-1)[:, None] - 2.0 * (pb @ pos.T)
              + pos_sq[None, :])
        d2 = jnp.where(bb[:, None] != batch[None, :], jnp.inf, d2)
        return lax.top_k(-d2, k)[1]

    starts = jnp.arange(0, n_pad, row_block, dtype=jnp.int32)
    idx = lax.map(block_fn, starts).reshape(n_pad, k)
    return idx[:n].astype(jnp.int32)


def decimate(tensors, ptr, decimation_factor):
    # TODO(synk): PyG's decimation_indices uses torch.randperm per graph; we
    # deterministically keep the first floor(n_i / d) points of each graph.
    ptr = np.asarray(ptr)
    counts = ptr[1:] - ptr[:-1]
    keep = counts // decimation_factor
    idx = np.concatenate(
        [np.arange(ptr[i], ptr[i] + keep[i]) for i in range(len(counts))])
    idx = jnp.asarray(idx, dtype=jnp.int32)
    ptr_decim = np.concatenate([[0], np.cumsum(keep)])
    return tuple(t[idx] for t in tensors), ptr_decim


# -------------------------------- parameters ---------------------------------

def init_linear(key, cin, cout, bias=True):
    kw, kb = jax.random.split(key)
    w = jax.random.normal(kw, (cin, cout), jnp.float32) / np.sqrt(cin)
    b = (0.1 * jax.random.normal(kb, (cout,), jnp.float32) if bias
         else jnp.zeros((cout,), jnp.float32))
    return w, b


def _bn_linear(key, cin, cout):
    """Linear + eval-mode BatchNorm1d(eps=1e-6): y = (x @ w) * scale + shift."""
    k1, k2 = jax.random.split(key)
    w, b = init_linear(k1, cin, cout)
    kg, kb2, km, kv = jax.random.split(k2, 4)
    gamma = 1.0 + 0.1 * jax.random.normal(kg, (cout,), jnp.float32)
    beta = 0.1 * jax.random.normal(kb2, (cout,), jnp.float32)
    mean = 0.1 * jax.random.normal(km, (cout,), jnp.float32)
    var = 1.0 + 0.1 * jax.random.uniform(kv, (cout,), jnp.float32)
    scale = gamma / jnp.sqrt(var + BN_EPS)
    shift = (b - mean) * scale + beta
    return w, scale, shift


def make_mlp(key, cin, cout):
    w, scale, shift = _bn_linear(key, cin, cout)
    # BN scale folded into the weight columns; bf16 pre-cast for MXU paths.
    return {'w': _prep_w(w * scale), 'shift': shift}


def make_lfa(key, channels):
    cx = channels // 2
    k1, k2, k3 = jax.random.split(key, 3)
    # mlp_encoder: SharedMLP([10, cx]) over cat([pos_i, pos_j, diff, dist]).
    w_e, scale_e, shift_e = _bn_linear(k1, 10, cx)
    w_ei, w_ej, w_ed, w_edist = w_e[0:3], w_e[3:6], w_e[6:9], w_e[9:10]
    # Re-expressed on (pos_i, diff, dist), diff computed in f32 by the wrapper:
    #   enc = pos_i @ (Wei + Wej) + diff @ (Wej + Wed) + dist * Wd
    w_ci = (w_ei + w_ej) * scale_e                              # (3, cx)
    w_rel = jnp.concatenate([w_ej + w_ed, w_edist], axis=0) * scale_e   # (4, cx)
    # mlp_attention: Linear(channels, channels), no bias / norm / act.
    w_att, _ = init_linear(k2, channels, channels, bias=False)
    # mlp_post_attention: SharedMLP([channels, channels]).
    w_p, scale_p, shift_p = _bn_linear(k3, channels, channels)
    return {
        'w_ci': w_ci.astype(jnp.float32),
        'w_rel': w_rel.astype(jnp.float32),
        'shift_e': shift_e,
        'w_att': _prep_w(w_att),
        'w_post': _prep_w(w_p * scale_p),
        'shift_p': shift_p,
    }


def make_block(key, d_in, d_out):
    k1, k2, k3, k4, k5 = jax.random.split(key, 5)
    w1, s1, sh1 = _bn_linear(k1, d_in, d_out // 8)       # mlp1 (LeakyReLU)
    wsc, ssc, shsc = _bn_linear(k2, d_in, d_out)         # shortcut (no act)
    # mlp1 + shortcut share one LHS -> one packed weight matrix; shortcut first
    # so its wide slice stays lane-aligned at offset 0.
    w_cat = jnp.concatenate([wsc * ssc, w1 * s1], axis=1)
    shift_cat = jnp.concatenate([shsc, sh1], axis=0)
    return {
        'front': {'w': _prep_w(w_cat), 'shift': shift_cat, 'c_sc': d_out},
        'mlp2': make_mlp(k3, d_out // 2, d_out),
        'lfa1': make_lfa(k4, d_out // 4),
        'lfa2': make_lfa(k5, d_out // 2),
    }


def make_net(key, num_features, num_classes):
    k = jax.random.split(key, 6)
    fc0_w, fc0_b = init_linear(k[0], num_features, 8)
    w_cls, s_cls, sh_cls = _bn_linear(k[4], 128, 32)
    fc_w, fc_b = init_linear(k[5], 32, num_classes)
    return {
        'fc0': {'w': fc0_w.astype(jnp.float32), 'b': fc0_b},
        'block1': make_block(k[1], 8, 32),
        'block2': make_block(k[2], 32, 128),
        'mlp1': make_mlp(k[3], 128, 128),
        # post-pooling head (num_graphs rows) stays in plain JAX, f32 weights
        'mlp_classif': {'w': w_cls * s_cls, 'shift': sh_cls},
        'fc_classif': {'w': fc_w, 'b': fc_b},
    }


# ---------------------------------- forward ----------------------------------

def dilated_block(p, num_neighbors, x, pos, batch, fc0=None):
    nbr = knn_graph_jax(pos, batch, num_neighbors)
    # fused: [fc0 ->] shortcut (Linear+BN) | mlp1 (Linear+BN+LeakyReLU)
    h, shortcut = block_front(x, p['front'], fc0_p=fc0)
    h = apply_lfa(p['lfa1'], nbr, h, pos)
    h = apply_lfa(p['lfa2'], nbr, h, pos)
    # mlp2 (Linear+BN, no act) fused with residual add + LeakyReLU
    h = shared_mlp(h, p['mlp2'], residual=shortcut)
    return h, pos, batch


def net_forward(params, x, pos, batch, ptr, *, num_graphs,
                decimation=4, num_neighbors=16):
    x = x if x is not None else pos
    b1 = dilated_block(params['block1'], num_neighbors, x, pos, batch,
                       fc0=params['fc0'])
    (x, pos, batch), ptr1 = decimate(b1, ptr, decimation)
    b2 = dilated_block(params['block2'], num_neighbors, x, pos, batch)
    (x, pos, batch), _ = decimate(b2, ptr1, decimation)
    x = shared_mlp(x, params['mlp1'], act=True)
    x = jax.ops.segment_max(x, batch, num_segments=num_graphs)   # MaxAggregation
    # Post-pooling head on (num_graphs, C): plain JAX (a pallas_call here would
    # be pure launch overhead + sub-(8,128) stores).
    # TODO(synk): Dropout(0.5) in mlp_classif treated as eval-mode identity.
    p = params['mlp_classif']
    h = _leaky(x @ p['w'] + p['shift'])
    fc = params['fc_classif']
    logits = h @ fc['w'] + fc['b']
    return jax.nn.log_softmax(logits, axis=-1)


# ------------------------------------ main ------------------------------------

if __name__ == "__main__":
    key = jax.random.PRNGKey(0)
    B = 2                 # graphs in the batch
    n_per_graph = 64      # points per graph (divisible by decimation 4*4)
    num_features = 6
    num_classes = 10
    N = B * n_per_graph

    kx, kp, kparam = jax.random.split(key, 3)
    x = jax.random.normal(kx, (N, num_features), jnp.float32)
    pos = jax.random.normal(kp, (N, 3), jnp.float32)
    batch = jnp.repeat(jnp.arange(B, dtype=jnp.int32), n_per_graph)
    ptr = np.array([0, n_per_graph, 2 * n_per_graph], dtype=np.int64)

    params = make_net(kparam, num_features, num_classes)
    logits = net_forward(params, x, pos, batch, ptr, num_graphs=B)
    logits = jax.block_until_ready(logits)

    assert logits.shape == (B, num_classes)
    assert np.allclose(np.exp(np.asarray(logits)).sum(axis=-1), 1.0, atol=1e-3)
    print("KERNEL_OK")
</pallas_src>

<mosaic_0001>
module attributes {stable_mosaic.version = 11 : i64} {
  func.func @_front_kernel(%arg0: i32, %arg1: memref<64x6xf32, #tpu.memory_space<vmem>>, %arg2: memref<6x8xf32, #tpu.memory_space<vmem>>, %arg3: memref<1x8xf32, #tpu.memory_space<vmem>>, %arg4: memref<8x36xf32, #tpu.memory_space<vmem>>, %arg5: memref<1x36xf32, #tpu.memory_space<vmem>>, %arg6: memref<64x4xf32, #tpu.memory_space<vmem>>, %arg7: memref<64x32xf32, #tpu.memory_space<vmem>>) attributes {dimension_semantics = [#tpu.dimension_semantics<parallel>], iteration_bounds = array<i64: 2>, scalar_prefetch = 0 : i64, scratch_operands = 0 : i64, tpu.core_type = #tpu.core_type<tc>, window_params = [{transform_indices = @transform_0, window_bounds = array<i64: 64, 6>}, {pipeline_mode = #tpu.pipeline_mode<synchronous>, transform_indices = @transform_1, window_bounds = array<i64: 6, 8>}, {pipeline_mode = #tpu.pipeline_mode<synchronous>, transform_indices = @transform_2, window_bounds = array<i64: 1, 8>}, {pipeline_mode = #tpu.pipeline_mode<synchronous>, transform_indices = @transform_3, window_bounds = array<i64: 8, 36>}, {pipeline_mode = #tpu.pipeline_mode<synchronous>, transform_indices = @transform_4, window_bounds = array<i64: 1, 36>}, {transform_indices = @transform_5, window_bounds = array<i64: 64, 4>}, {transform_indices = @transform_6, window_bounds = array<i64: 64, 32>}]} {
    %c0 = arith.constant 0 : index
    %c0_0 = arith.constant 0 : index
    %0 = vector.load %arg1[%c0, %c0_0] : memref<64x6xf32, #tpu.memory_space<vmem>>, vector<64x6xf32>
    %c0_1 = arith.constant 0 : index
    %c0_2 = arith.constant 0 : index
    %1 = vector.load %arg2[%c0_1, %c0_2] : memref<6x8xf32, #tpu.memory_space<vmem>>, vector<6x8xf32>
    %2 = vector.extract_strided_slice %0 {offsets = [0, 0], sizes = [64, 1], strides = [1, 1]} : vector<64x6xf32> to vector<64x1xf32>
    %3 = vector.extract_strided_slice %1 {offsets = [0, 0], sizes = [1, 8], strides = [1, 1]} : vector<6x8xf32> to vector<1x8xf32>
    %4 = vector.broadcast %2 : vector<64x1xf32> to vector<64x8xf32>
    %5 = vector.broadcast %3 : vector<1x8xf32> to vector<64x8xf32>
    %6 = arith.mulf %4, %5 : vector<64x8xf32>
    %7 = vector.extract_strided_slice %0 {offsets = [0, 1], sizes = [64, 1], strides = [1, 1]} : vector<64x6xf32> to vector<64x1xf32>
    %8 = vector.extract_strided_slice %1 {offsets = [1, 0], sizes = [1, 8], strides = [1, 1]} : vector<6x8xf32> to vector<1x8xf32>
    %9 = vector.broadcast %7 : vector<64x1xf32> to vector<64x8xf32>
    %10 = vector.broadcast %8 : vector<1x8xf32> to vector<64x8xf32>
    %11 = arith.mulf %9, %10 : vector<64x8xf32>
    %12 = arith.addf %6, %11 : vector<64x8xf32>
    %13 = vector.extract_strided_slice %0 {offsets = [0, 2], sizes = [64, 1], strides = [1, 1]} : vector<64x6xf32> to vector<64x1xf32>
    %14 = vector.extract_strided_slice %1 {offsets = [2, 0], sizes = [1, 8], strides = [1, 1]} : vector<6x8xf32> to vector<1x8xf32>
    %15 = vector.broadcast %13 : vector<64x1xf32> to vector<64x8xf32>
    %16 = vector.broadcast %14 : vector<1x8xf32> to vector<64x8xf32>
    %17 = arith.mulf %15, %16 : vector<64x8xf32>
    %18 = arith.addf %12, %17 : vector<64x8xf32>
    %19 = vector.extract_strided_slice %0 {offsets = [0, 3], sizes = [64, 1], strides = [1, 1]} : vector<64x6xf32> to vector<64x1xf32>
    %20 = vector.extract_strided_slice %1 {offsets = [3, 0], sizes = [1, 8], strides = [1, 1]} : vector<6x8xf32> to vector<1x8xf32>
    %21 = vector.broadcast %19 : vector<64x1xf32> to vector<64x8xf32>
    %22 = vector.broadcast %20 : vector<1x8xf32> to vector<64x8xf32>
    %23 = arith.mulf %21, %22 : vector<64x8xf32>
    %24 = arith.addf %18, %23 : vector<64x8xf32>
    %25 = vector.extract_strided_slice %0 {offsets = [0, 4], sizes = [64, 1], strides = [1, 1]} : vector<64x6xf32> to vector<64x1xf32>
    %26 = vector.extract_strided_slice %1 {offsets = [4, 0], sizes = [1, 8], strides = [1, 1]} : vector<6x8xf32> to vector<1x8xf32>
    %27 = vector.broadcast %25 : vector<64x1xf32> to vector<64x8xf32>
    %28 = vector.broadcast %26 : vector<1x8xf32> to vector<64x8xf32>
    %29 = arith.mulf %27, %28 : vector<64x8xf32>
    %30 = arith.addf %24, %29 : vector<64x8xf32>
    %31 = vector.extract_strided_slice %0 {offsets = [0, 5], sizes = [64, 1], strides = [1, 1]} : vector<64x6xf32> to vector<64x1xf32>
    %32 = vector.extract_strided_slice %1 {offsets = [5, 0], sizes = [1, 8], strides = [1, 1]} : vector<6x8xf32> to vector<1x8xf32>
    %33 = vector.broadcast %31 : vector<64x1xf32> to vector<64x8xf32>
    %34 = vector.broadcast %32 : vector<1x8xf32> to vector<64x8xf32>
    %35 = arith.mulf %33, %34 : vector<64x8xf32>
    %36 = arith.addf %30, %35 : vector<64x8xf32>
    %c0_3 = arith.constant 0 : index
    %c0_4 = arith.constant 0 : index
    %37 = vector.load %arg3[%c0_3, %c0_4] : memref<1x8xf32, #tpu.memory_space<vmem>>, vector<1x8xf32>
    %38 = vector.broadcast %37 : vector<1x8xf32> to vector<64x8xf32>
    %39 = arith.addf %36, %38 : vector<64x8xf32>
    %c0_5 = arith.constant 0 : index
    %c0_6 = arith.constant 0 : index
    %40 = vector.load %arg4[%c0_5, %c0_6] : memref<8x36xf32, #tpu.memory_space<vmem>>, vector<8x36xf32>
    %41 = vector.extract_strided_slice %39 {offsets = [0, 0], sizes = [64, 1], strides = [1, 1]} : vector<64x8xf32> to vector<64x1xf32>
    %42 = vector.extract_strided_slice %40 {offsets = [0, 0], sizes = [1, 36], strides = [1, 1]} : vector<8x36xf32> to vector<1x36xf32>
    %43 = vector.broadcast %41 : vector<64x1xf32> to vector<64x36xf32>
    %44 = vector.broadcast %42 : vector<1x36xf32> to vector<64x36xf32>
    %45 = arith.mulf %43, %44 : vector<64x36xf32>
    %46 = vector.extract_strided_slice %39 {offsets = [0, 1], sizes = [64, 1], strides = [1, 1]} : vector<64x8xf32> to vector<64x1xf32>
    %47 = vector.extract_strided_slice %40 {offsets = [1, 0], sizes = [1, 36], strides = [1, 1]} : vector<8x36xf32> to vector<1x36xf32>
    %48 = vector.broadcast %46 : vector<64x1xf32> to vector<64x36xf32>
    %49 = vector.broadcast %47 : vector<1x36xf32> to vector<64x36xf32>
    %50 = arith.mulf %48, %49 : vector<64x36xf32>
    %51 = arith.addf %45, %50 : vector<64x36xf32>
    %52 = vector.extract_strided_slice %39 {offsets = [0, 2], sizes = [64, 1], strides = [1, 1]} : vector<64x8xf32> to vector<64x1xf32>
    %53 = vector.extract_strided_slice %40 {offsets = [2, 0], sizes = [1, 36], strides = [1, 1]} : vector<8x36xf32> to vector<1x36xf32>
    %54 = vector.broadcast %52 : vector<64x1xf32> to vector<64x36xf32>
    %55 = vector.broadcast %53 : vector<1x36xf32> to vector<64x36xf32>
    %56 = arith.mulf %54, %55 : vector<64x36xf32>
    %57 = arith.addf %51, %56 : vector<64x36xf32>
    %58 = vector.extract_strided_slice %39 {offsets = [0, 3], sizes = [64, 1], strides = [1, 1]} : vector<64x8xf32> to vector<64x1xf32>
    %59 = vector.extract_strided_slice %40 {offsets = [3, 0], sizes = [1, 36], strides = [1, 1]} : vector<8x36xf32> to vector<1x36xf32>
    %60 = vector.broadcast %58 : vector<64x1xf32> to vector<64x36xf32>
    %61 = vector.broadcast %59 : vector<1x36xf32> to vector<64x36xf32>
    %62 = arith.mulf %60, %61 : vector<64x36xf32>
    %63 = arith.addf %57, %62 : vector<64x36xf32>
    %64 = vector.extract_strided_slice %39 {offsets = [0, 4], sizes = [64, 1], strides = [1, 1]} : vector<64x8xf32> to vector<64x1xf32>
    %65 = vector.extract_strided_slice %40 {offsets = [4, 0], sizes = [1, 36], strides = [1, 1]} : vector<8x36xf32> to vector<1x36xf32>
    %66 = vector.broadcast %64 : vector<64x1xf32> to vector<64x36xf32>
    %67 = vector.broadcast %65 : vector<1x36xf32> to vector<64x36xf32>
    %68 = arith.mulf %66, %67 : vector<64x36xf32>
    %69 = arith.addf %63, %68 : vector<64x36xf32>
    %70 = vector.extract_strided_slice %39 {offsets = [0, 5], sizes = [64, 1], strides = [1, 1]} : vector<64x8xf32> to vector<64x1xf32>
    %71 = vector.extract_strided_slice %40 {offsets = [5, 0], sizes = [1, 36], strides = [1, 1]} : vector<8x36xf32> to vector<1x36xf32>
    %72 = vector.broadcast %70 : vector<64x1xf32> to vector<64x36xf32>
    %73 = vector.broadcast %71 : vector<1x36xf32> to vector<64x36xf32>
    %74 = arith.mulf %72, %73 : vector<64x36xf32>
    %75 = arith.addf %69, %74 : vector<64x36xf32>
    %76 = vector.extract_strided_slice %39 {offsets = [0, 6], sizes = [64, 1], strides = [1, 1]} : vector<64x8xf32> to vector<64x1xf32>
    %77 = vector.extract_strided_slice %40 {offsets = [6, 0], sizes = [1, 36], strides = [1, 1]} : vector<8x36xf32> to vector<1x36xf32>
    %78 = vector.broadcast %76 : vector<64x1xf32> to vector<64x36xf32>
    %79 = vector.broadcast %77 : vector<1x36xf32> to vector<64x36xf32>
    %80 = arith.mulf %78, %79 : vector<64x36xf32>
    %81 = arith.addf %75, %80 : vector<64x36xf32>
    %82 = vector.extract_strided_slice %39 {offsets = [0, 7], sizes = [64, 1], strides = [1, 1]} : vector<64x8xf32> to vector<64x1xf32>
    %83 = vector.extract_strided_slice %40 {offsets = [7, 0], sizes = [1, 36], strides = [1, 1]} : vector<8x36xf32> to vector<1x36xf32>
    %84 = vector.broadcast %82 : vector<64x1xf32> to vector<64x36xf32>
    %85 = vector.broadcast %83 : vector<1x36xf32> to vector<64x36xf32>
    %86 = arith.mulf %84, %85 : vector<64x36xf32>
    %87 = arith.addf %81, %86 : vector<64x36xf32>
    %c0_7 = arith.constant 0 : index
    %c0_8 = arith.constant 0 : index
    %88 = vector.load %arg5[%c0_7, %c0_8] : memref<1x36xf32, #tpu.memory_space<vmem>>, vector<1x36xf32>
    %89 = vector.broadcast %88 : vector<1x36xf32> to vector<64x36xf32>
    %90 = arith.addf %87, %89 : vector<64x36xf32>
    %91 = vector.extract_strided_slice %90 {offsets = [0, 0], sizes = [64, 32], strides = [1, 1]} : vector<64x36xf32> to vector<64x32xf32>
    %c0_9 = arith.constant 0 : index
    %c0_10 = arith.constant 0 : index
    %92 = vector.load %arg7[%c0_9, %c0_10] : memref<64x32xf32, #tpu.memory_space<vmem>>, vector<64x32xf32>
    tpu.vector_store %arg7[%c0_9, %c0_10], %91 {strides = array<i32>} : memref<64x32xf32, #tpu.memory_space<vmem>>, vector<64x32xf32>,
    %93 = vector.extract_strided_slice %90 {offsets = [0, 32], sizes = [64, 4], strides = [1, 1]} : vector<64x36xf32> to vector<64x4xf32>
    %cst = arith.constant 0.000000e+00 : f32
    %94 = vector.broadcast %cst : f32 to vector<64x4xf32>
    %95 = arith.cmpf oge, %93, %94 : vector<64x4xf32>
    %cst_11 = arith.constant 2.000000e-01 : f32
    %96 = vector.broadcast %cst_11 : f32 to vector<64x4xf32>
    %97 = arith.mulf %96, %93 : vector<64x4xf32>
    %98 = arith.select %95, %93, %97 : vector<64x4xi1>, vector<64x4xf32>
    %c0_12 = arith.constant 0 : index
    %c0_13 = arith.constant 0 : index
    %99 = vector.load %arg6[%c0_12, %c0_13] : memref<64x4xf32, #tpu.memory_space<vmem>>, vector<64x4xf32>
    tpu.vector_store %arg6[%c0_12, %c0_13], %98 {strides = array<i32>} : memref<64x4xf32, #tpu.memory_space<vmem>>, vector<64x4xf32>,
    return
  }
  func.func @transform_0(%arg0: i32) -> (i32, i32) {
    %c0_i32 = arith.constant 0 : i32
    %c0_i32_0 = arith.constant 0 : i32
    return %arg0, %c0_i32 : i32, i32
  }
  func.func @transform_1(%arg0: i32) -> (i32, i32) {
    %c0_i32 = arith.constant 0 : i32
    %c0_i32_0 = arith.constant 0 : i32
    %c0_i32_1 = arith.constant 0 : i32
    return %c0_i32, %c0_i32_0 : i32, i32
  }
  func.func @transform_2(%arg0: i32) -> (i32, i32) {
    %c0_i32 = arith.constant 0 : i32
    %c0_i32_0 = arith.constant 0 : i32
    %c0_i32_1 = arith.constant 0 : i32
    return %c0_i32, %c0_i32_0 : i32, i32
  }
  func.func @transform_3(%arg0: i32) -> (i32, i32) {
    %c0_i32 = arith.constant 0 : i32
    %c0_i32_0 = arith.constant 0 : i32
    %c0_i32_1 = arith.constant 0 : i32
    return %c0_i32, %c0_i32_0 : i32, i32
  }
  func.func @transform_4(%arg0: i32) -> (i32, i32) {
    %c0_i32 = arith.constant 0 : i32
    %c0_i32_0 = arith.constant 0 : i32
    %c0_i32_1 = arith.constant 0 : i32
    return %c0_i32, %c0_i32_0 : i32, i32
  }
  func.func @transform_5(%arg0: i32) -> (i32, i32) {
    %c0_i32 = arith.constant 0 : i32
    %c0_i32_0 = arith.constant 0 : i32
    return %arg0, %c0_i32 : i32, i32
  }
  func.func @transform_6(%arg0: i32) -> (i32, i32) {
    %c0_i32 = arith.constant 0 : i32
    %c0_i32_0 = arith.constant 0 : i32
    return %arg0, %c0_i32 : i32, i32
  }
}

</mosaic_0001>

<llo_original>
// kernel: tpu_custom_call.1
$region0: #{tpu_custom_call.1}
  #allocation0 [shape = 'u32[]', space=smem, size = 0x4, offset = 0x4, fixed_abs, tag = 'smem constant byte address 0x4 - core index']
  #allocation1 [shape = 'u32[144,128]{1,0:T(1,128)}', space=vmem, size = 0x12000, scoped, tag = 'internal scratch']
  %s0 = inlined_call_operand.vmem [shape: f32[128,6], index: 0, kind: input, shape index: {}]
  %s1 = inlined_call_operand.vmem [shape: f32[6,8], index: 1, kind: input, shape index: {}]
  %s2 = inlined_call_operand.vmem [shape: f32[1,8], index: 2, kind: input, shape index: {}]
  %s3 = inlined_call_operand.vmem [shape: f32[8,36], index: 3, kind: input, shape index: {}]
  %s4 = inlined_call_operand.vmem [shape: f32[1,36], index: 4, kind: input, shape index: {}]
  %s5 = inlined_call_operand.vmem [shape: f32[128,4], index: 5, kind: output, shape index: {0}]
  %s6 = inlined_call_operand.vmem [shape: f32[128,32], index: 6, kind: output, shape index: {1}]
  %7 = xla_tuple %s5, %s6
  %s8 = sld [smem:[#allocation0]]
  $region61: #{tpu_custom_call.1} parent=0
    _
  %s10 = ssub.s32 1, %s8
  %s11 = scalar_select 0, %s10, %s8
  loop: start=0, step=1, limit=4
  $region2: #{tpu_custom_call.1} parent=0 // loop_pre_header
    _
  $region3: #{tpu_custom_call.1} parent=0 // loop_header
    %s13 = sphi 0, %s17
    %p14 = scmp.ge.s32.totalorder %s13, 4
    %s23 = sphi 0, %s25
    %s26 = sphi 0, %s23
    %s27 = sphi 0, %s26
    %s43 = sphi 0, %s27
    %s47 = sphi 0, %s47
    %s49 = sphi 0, %s47
    %s50 = sphi 0, %s49
    %s64 = sphi 0, %s50
    %s68 = sphi 0, %s68
    %s70 = sphi 0, %s68
    %s71 = sphi 0, %s70
    %s85 = sphi 0, %s71
    %s89 = sphi 0, %s89
    %s91 = sphi 0, %s89
    %s92 = sphi 0, %s91
    %s106 = sphi 0, %s92
    %s110 = sphi 0, %s110
    %s112 = sphi 0, %s110
    %s113 = sphi 0, %s112
    %s127 = sphi 0, %s113
    %s133 = sphi 0, %s135
    %s136 = sphi 0, %s133
    %s137 = sphi 0, %s136
    %s153 = sphi 0, %s137
    %s159 = sphi 0, %s161
    %s162 = sphi 0, %s159
    %s163 = sphi 0, %s162
    %s179 = sphi 0, %s163
  $region4: #{tpu_custom_call.1} parent=0 // loop_header_branch
    %16 = sbr.rel (%p14) target = $region8
  $region5: #{tpu_custom_call.1} parent=0 // loop_body
    %s18 = ssub.s32 %s13, 1
    %s19 = ssub.s32 %s13, 2
    %s20 = sadd.s32 %s13, 1
    %s21 = ssub.s32 %s13, %s20
    %p22 = scmp.eq.s32.totalorder %s21, 0
    %s24 = sadd.s32 %s23, 1
    %s25 = scalar_select %p22, %s23, %s24
    %p28 = pneg %p22
    %p29 = scmp.eq.s32.totalorder %s13, 1
    %p30 = por %p28, %p29
    %p31 = scmp.ne.s32.totalorder %s23, %s26
    %p32 = scmp.eq.s32.totalorder %s13, 0
    %p33 = por %p31, %p32
    %p34 = scmp.ne.s32.totalorder %s23, %s26
    %p35 = scmp.eq.s32.totalorder %s18, 1
    %p36 = por %p34, %p35
    %p37 = scmp.ne.s32.totalorder %s26, %s27
    %p38 = scmp.eq.s32.totalorder %s18, 0
    %p39 = por %p37, %p38
    %p40 = scmp.ne.s32.totalorder %s26, %s27
    %p41 = scmp.eq.s32.totalorder %s19, 1
    %p42 = por %p40, %p41
    %p44 = scmp.ne.s32.totalorder %s27, %s43
    %p45 = scmp.eq.s32.totalorder %s19, 0
    %p46 = por %p44, %p45
    %s48 = sadd.s32 %s47, 1
    %p51 = scmp.eq.s32.totalorder %s13, 1
    %p52 = scmp.ne.s32.totalorder %s47, %s49
    %p53 = scmp.eq.s32.totalorder %s13, 0
    %p54 = por %p52, %p53
    %p55 = scmp.ne.s32.totalorder %s47, %s49
    %p56 = scmp.eq.s32.totalorder %s18, 1
    %p57 = por %p55, %p56
    %p58 = scmp.ne.s32.totalorder %s49, %s50
    %p59 = scmp.eq.s32.totalorder %s18, 0
    %p60 = por %p58, %p59
    %p61 = scmp.ne.s32.totalorder %s49, %s50
    %p62 = scmp.eq.s32.totalorder %s19, 1
    %p63 = por %p61, %p62
    %p65 = scmp.ne.s32.totalorder %s50, %s64
    %p66 = scmp.eq.s32.totalorder %s19, 0
    %p67 = por %p65, %p66
    %s69 = sadd.s32 %s68, 1
    %p72 = scmp.eq.s32.totalorder %s13, 1
    %p73 = scmp.ne.s32.totalorder %s68, %s70
    %p74 = scmp.eq.s32.totalorder %s13, 0
    %p75 = por %p73, %p74
    %p76 = scmp.ne.s32.totalorder %s68, %s70
    %p77 = scmp.eq.s32.totalorder %s18, 1
    %p78 = por %p76, %p77
    %p79 = scmp.ne.s32.totalorder %s70, %s71
    %p80 = scmp.eq.s32.totalorder %s18, 0
    %p81 = por %p79, %p80
    %p82 = scmp.ne.s32.totalorder %s70, %s71
    %p83 = scmp.eq.s32.totalorder %s19, 1
    %p84 = por %p82, %p83
    %p86 = scmp.ne.s32.totalorder %s71, %s85
    %p87 = scmp.eq.s32.totalorder %s19, 0
    %p88 = por %p86, %p87
    %s90 = sadd.s32 %s89, 1
    %p93 = scmp.eq.s32.totalorder %s13, 1
    %p94 = scmp.ne.s32.totalorder %s89, %s91
    %p95 = scmp.eq.s32.totalorder %s13, 0
    %p96 = por %p94, %p95
    %p97 = scmp.ne.s32.totalorder %s89, %s91
    %p98 = scmp.eq.s32.totalorder %s18, 1
    %p99 = por %p97, %p98
    %p100 = scmp.ne.s32.totalorder %s91, %s92
    %p101 = scmp.eq.s32.totalorder %s18, 0
    %p102 = por %p100, %p101
    %p103 = scmp.ne.s32.totalorder %s91, %s92
    %p104 = scmp.eq.s32.totalorder %s19, 1
    %p105 = por %p103, %p104
    %p107 = scmp.ne.s32.totalorder %s92, %s106
    %p108 = scmp.eq.s32.totalorder %s19, 0
    %p109 = por %p107, %p108
    %s111 = sadd.s32 %s110, 1
    %p114 = scmp.eq.s32.totalorder %s13, 1
    %p115 = scmp.ne.s32.totalorder %s110, %s112
    %p116 = scmp.eq.s32.totalorder %s13, 0
    %p117 = por %p115, %p116
    %p118 = scmp.ne.s32.totalorder %s110, %s112
    %p119 = scmp.eq.s32.totalorder %s18, 1
    %p120 = por %p118, %p119
    %p121 = scmp.ne.s32.totalorder %s112, %s113
    %p122 = scmp.eq.s32.totalorder %s18, 0
    %p123 = por %p121, %p122
    %p124 = scmp.ne.s32.totalorder %s112, %s113
    %p125 = scmp.eq.s32.totalorder %s19, 1
    %p126 = por %p124, %p125
    %p128 = scmp.ne.s32.totalorder %s113, %s127
    %p129 = scmp.eq.s32.totalorder %s19, 0
    %p130 = por %p128, %p129
    %s131 = ssub.s32 %s13, %s20
    %p132 = scmp.eq.s32.totalorder %s131, 0
    %s134 = sadd.s32 %s133, 1
    %s135 = scalar_select %p132, %s133, %s134
    %p138 = pneg %p132
    %p139 = scmp.eq.s32.totalorder %s13, 1
    %p140 = por %p138, %p139
    %p141 = scmp.ne.s32.totalorder %s133, %s136
    %p142 = scmp.eq.s32.totalorder %s13, 0
    %p143 = por %p141, %p142
    %p144 = scmp.ne.s32.totalorder %s133, %s136
    %p145 = scmp.eq.s32.totalorder %s18, 1
    %p146 = por %p144, %p145
    %p147 = scmp.ne.s32.totalorder %s136, %s137
    %p148 = scmp.eq.s32.totalorder %s18, 0
    %p149 = por %p147, %p148
    %p150 = scmp.ne.s32.totalorder %s136, %s137
    %p151 = scmp.eq.s32.totalorder %s19, 1
    %p152 = por %p150, %p151
    %p154 = scmp.ne.s32.totalorder %s137, %s153
    %p155 = scmp.eq.s32.totalorder %s19, 0
    %p156 = por %p154, %p155
    %s157 = ssub.s32 %s13, %s20
    %p158 = scmp.eq.s32.totalorder %s157, 0
    %s160 = sadd.s32 %s159, 1
    %s161 = scalar_select %p158, %s159, %s160
    %p164 = pneg %p158
    %p165 = scmp.eq.s32.totalorder %s13, 1
    %p166 = por %p164, %p165
    %p167 = scmp.ne.s32.totalorder %s159, %s162
    %p168 = scmp.eq.s32.totalorder %s13, 0
    %p169 = por %p167, %p168
    %p170 = scmp.ne.s32.totalorder %s159, %s162
    %p171 = scmp.eq.s32.totalorder %s18, 1
    %p172 = por %p170, %p171
    %p173 = scmp.ne.s32.totalorder %s162, %s163
    %p174 = scmp.eq.s32.totalorder %s18, 0
    %p175 = por %p173, %p174
    %p176 = scmp.ne.s32.totalorder %s162, %s163
    %p177 = scmp.eq.s32.totalorder %s19, 1
    %p178 = por %p176, %p177
    %p180 = scmp.ne.s32.totalorder %s163, %s179
    %p181 = scmp.eq.s32.totalorder %s19, 0
    %p182 = por %p180, %p181
    %p183 = scmp.le.s32.totalorder 1, %s13
    %p184 = scmp.lt.s32.totalorder %s13, 3
    %p185 = pnand %p183, %p184
    %p186 = pneg %p185
    // Predicated region
    $region9: #{tpu_custom_call.1} parent=5 // pred_check
      _
    $region10: #{tpu_custom_call.1} parent=5 // pred_check_branch
      %188 = sbr.rel (%p185) target = $region12
    $region11: #{tpu_custom_call.1} parent=5 // pred_region
      %s189 = ssub.s32 %s13, 1
      // Predicated region
      $region13: #{tpu_custom_call.1} parent=11 // pred_check
        %p190 = pneg %p60
      $region14: #{tpu_custom_call.1} parent=11 // pred_check_branch
        %192 = sbr.rel (%p190) target = $region16
      $region15: #{tpu_custom_call.1} parent=11 // pred_region
        _
      $region16: #{tpu_custom_call.1} parent=11 // pred_fallthru
        _
      // Predicated region
      $region17: #{tpu_custom_call.1} parent=11 // pred_check
        %p193 = pneg %p81
      $region18: #{tpu_custom_call.1} parent=11 // pred_check_branch
        %195 = sbr.rel (%p193) target = $region20
      $region19: #{tpu_custom_call.1} parent=11 // pred_region
        _
      $region20: #{tpu_custom_call.1} parent=11 // pred_fallthru
        _
      // Predicated region
      $region21: #{tpu_custom_call.1} parent=11 // pred_check
        %p196 = pneg %p102
      $region22: #{tpu_custom_call.1} parent=11 // pred_check_branch
        %198 = sbr.rel (%p196) target = $region24
      $region23: #{tpu_custom_call.1} parent=11 // pred_region
        _
      $region24: #{tpu_custom_call.1} parent=11 // pred_fallthru
        _
      // Predicated region
      $region25: #{tpu_custom_call.1} parent=11 // pred_check
        %p199 = pneg %p123
      $region26: #{tpu_custom_call.1} parent=11 // pred_check_branch
        %201 = sbr.rel (%p199) target = $region28
      $region27: #{tpu_custom_call.1} parent=11 // pred_region
        _
      $region28: #{tpu_custom_call.1} parent=11 // pred_fallthru
        _
    $region12: #{tpu_custom_call.1} parent=5 // pred_fallthru
      _
    %p202 = scmp.lt.s32.totalorder %s13, 2
    // Predicated region
    $region29: #{tpu_custom_call.1} parent=5 // pred_check
      %p203 = pneg %p202
    $region30: #{tpu_custom_call.1} parent=5 // pred_check_branch
      %205 = sbr.rel (%p203) target = $region32
    $region31: #{tpu_custom_call.1} parent=5 // pred_region
      // Predicated region
      $region33: #{tpu_custom_call.1} parent=31 // pred_check
        %p206 = pneg %p33
      $region34: #{tpu_custom_call.1} parent=31 // pred_check_branch
        %208 = sbr.rel (%p206) target = $region36
      $region35: #{tpu_custom_call.1} parent=31 // pred_region
        %s209 = smul.u32 8, %s13
        %p210 = scmp.lt.s32.totalorder %s209, 15
        %s211 = scalar_select %p210, %s209, 15
        %s212 = smul.addr %s211, 8
        %s213 = scalar_lea.vmem %s0, %s212
        %s214 = smul.u32 8, %s13
      $region36: #{tpu_custom_call.1} parent=31 // pred_fallthru
        _
    $region32: #{tpu_custom_call.1} parent=5 // pred_fallthru
      _
    %p215 = scmp.le.s32.totalorder 1, %s13
    %p216 = scmp.lt.s32.totalorder %s13, 3
    %p217 = pnand %p215, %p216
    %p218 = pneg %p217
    // Predicated region
    $region37: #{tpu_custom_call.1} parent=5 // pred_check
      _
    $region38: #{tpu_custom_call.1} parent=5 // pred_check_branch
      %220 = sbr.rel (%p217) target = $region40
    $region39: #{tpu_custom_call.1} parent=5 // pred_region
      %s221 = ssub.s32 %s13, 1
      %s222 = smul.u32 8, %s18
      %p223 = scmp.lt.s32.totalorder %s222, 15
      %s224 = scalar_select %p223, %s222, 15
      %s225 = smul.addr %s224, 8
      %s226 = scalar_lea.vmem %s0, %s225
      %p227 = pneg %p39
      %p228 = pneg %p36
      %p229 = pneg %p60
      %p230 = pneg %p57
      %p231 = pneg %p81
      %p232 = pneg %p78
      %p233 = pneg %p102
      %p234 = pneg %p99
      %p235 = pneg %p123
      %p236 = pneg %p120
      %p237 = pneg %p149
      %p238 = pneg %p146
      %s239 = smul.u32 8, %s18
      %p240 = scmp.lt.s32.totalorder %s239, 15
      %s241 = scalar_select %p240, %s239, 15
      %s242 = smul.addr %s241, 8
      %s243 = scalar_lea.vmem %s5, %s242
      %p244 = pneg %p175
      %p245 = pneg %p172
      %s246 = smul.u32 8, %s18
      %p247 = scmp.lt.s32.totalorder %s246, 15
      %s248 = scalar_select %p247, %s246, 15
      %s249 = smul.addr %s248, 8
      %s250 = scalar_lea.vmem %s6, %s249
      %s251 = smul.u32 8, %s18
      %p252 = scmp.lt.s32.totalorder %s251, 15
      %s253 = scalar_select %p252, %s251, 15
      %s254 = smul.addr %s253, 8
      %s255 = scalar_lea.vmem %s0, %s254
      %s256 = smul.u32 8, %s18
      %s257 = smul.u32 8, %s18
      %p258 = scmp.lt.s32.totalorder %s257, 15
      %s259 = scalar_select %p258, %s257, 15
      %s260 = smul.addr %s259, 8
      %s261 = scalar_lea.vmem %s5, %s260
      %s262 = smul.u32 8, %s18
      %s263 = smul.u32 8, %s18
      %p264 = scmp.lt.s32.totalorder %s263, 15
      %s265 = scalar_select %p264, %s263, 15
      %s266 = smul.addr %s265, 8
      %s267 = scalar_lea.vmem %s6, %s266
      %s268 = smul.u32 8, %s18
      %v269 = vld [vmem:[%s255] sm:$0xff]
      %v270 = vld [vmem:[%s255 + $0x8] sm:$0xff]
      %v271 = vld [vmem:[%s255 + $0x10] sm:$0xff]
      %v272 = vld [vmem:[%s255 + $0x18] sm:$0xff]
      %v273 = vld [vmem:[%s255 + $0x20] sm:$0xff]
      %v274 = vld [vmem:[%s255 + $0x28] sm:$0xff]
      %v275 = vld [vmem:[%s255 + $0x30] sm:$0xff]
      %v276 = vld [vmem:[%s255 + $0x38] sm:$0xff]
      %v277 = vld [vmem:[%s1] sm:$0x3f]
      %279 = vset.pattern.permute.xlu0 0
      %280 = vperm.xlu0 %279, %v269
      %v281 = vpop.permute.xlu0 %280
      %284 = vset.pattern.permute.xlu0 0
      %285 = vperm.xlu0 %284, %v270
      %v286 = vpop.permute.xlu0 %285
      %289 = vset.pattern.permute.xlu0 0
      %290 = vperm.xlu0 %289, %v271
      %v291 = vpop.permute.xlu0 %290
      %294 = vset.pattern.permute.xlu0 0
      %295 = vperm.xlu0 %294, %v272
      %v296 = vpop.permute.xlu0 %295
      %299 = vset.pattern.permute.xlu0 0
      %300 = vperm.xlu0 %299, %v273
      %v301 = vpop.permute.xlu0 %300
      %304 = vset.pattern.permute.xlu0 0
      %305 = vperm.xlu0 %304, %v274
      %v306 = vpop.permute.xlu0 %305
      %309 = vset.pattern.permute.xlu0 0
      %310 = vperm.xlu0 %309, %v275
      %v311 = vpop.permute.xlu0 %310
      %314 = vset.pattern.permute.xlu0 0
      %315 = vperm.xlu0 %314, %v276
      %v316 = vpop.permute.xlu0 %315
      %v318 = vlaneseq
      %v319 = vshrl.u32 %v318, 7
      %v320 = vsub.s32 0, %v319
      %v321 = vrot.slane %v277, %v320
      %v322 = vmul.f32 %v281, %v321
      %v323 = vmul.f32 %v286, %v321
      %v324 = vmul.f32 %v291, %v321
      %v325 = vmul.f32 %v296, %v321
      %v326 = vmul.f32 %v301, %v321
      %v327 = vmul.f32 %v306, %v321
      %v328 = vmul.f32 %v311, %v321
      %v329 = vmul.f32 %v316, %v321
      %330 = vset.pattern.permute.xlu0 1
      %331 = vperm.xlu0 %330, %v269
      %v332 = vpop.permute.xlu0 %331
      %334 = vset.pattern.permute.xlu0 1
      %335 = vperm.xlu0 %334, %v270
      %v336 = vpop.permute.xlu0 %335
      %338 = vset.pattern.permute.xlu0 1
      %339 = vperm.xlu0 %338, %v271
      %v340 = vpop.permute.xlu0 %339
      %342 = vset.pattern.permute.xlu0 1
      %343 = vperm.xlu0 %342, %v272
      %v344 = vpop.permute.xlu0 %343
      %346 = vset.pattern.permute.xlu0 1
      %347 = vperm.xlu0 %346, %v273
      %v348 = vpop.permute.xlu0 %347
      %350 = vset.pattern.permute.xlu0 1
      %351 = vperm.xlu0 %350, %v274
      %v352 = vpop.permute.xlu0 %351
      %354 = vset.pattern.permute.xlu0 1
      %355 = vperm.xlu0 %354, %v275
      %v356 = vpop.permute.xlu0 %355
      %358 = vset.pattern.permute.xlu0 1
      %359 = vperm.xlu0 %358, %v276
      %v360 = vpop.permute.xlu0 %359
      %v362 = vlaneseq
      %v363 = vshrl.u32 %v362, 7
      %v364 = vsub.s32 1, %v363
      %v365 = vrot.slane %v277, %v364
      %v366 = vmul.f32 %v332, %v365
      %v367 = vmul.f32 %v336, %v365
      %v368 = vmul.f32 %v340, %v365
      %v369 = vmul.f32 %v344, %v365
      %v370 = vmul.f32 %v348, %v365
      %v371 = vmul.f32 %v352, %v365
      %v372 = vmul.f32 %v356, %v365
      %v373 = vmul.f32 %v360, %v365
      %v374 = vadd.f32 %v322, %v366
      %v375 = vadd.f32 %v323, %v367
      %v376 = vadd.f32 %v324, %v368
      %v377 = vadd.f32 %v325, %v369
      %v378 = vadd.f32 %v326, %v370
      %v379 = vadd.f32 %v327, %v371
      %v380 = vadd.f32 %v328, %v372
      %v381 = vadd.f32 %v329, %v373
      %382 = vset.pattern.permute.xlu0 2
      %383 = vperm.xlu0 %382, %v269
      %v384 = vpop.permute.xlu0 %383
      %386 = vset.pattern.permute.xlu0 2
      %387 = vperm.xlu0 %386, %v270
      %v388 = vpop.permute.xlu0 %387
      %390 = vset.pattern.permute.xlu0 2
      %391 = vperm.xlu0 %390, %v271
      %v392 = vpop.permute.xlu0 %391
      %394 = vset.pattern.permute.xlu0 2
      %395 = vperm.xlu0 %394, %v272
      %v396 = vpop.permute.xlu0 %395
      %398 = vset.pattern.permute.xlu0 2
      %399 = vperm.xlu0 %398, %v273
      %v400 = vpop.permute.xlu0 %399
      %402 = vset.pattern.permute.xlu0 2
      %403 = vperm.xlu0 %402, %v274
      %v404 = vpop.permute.xlu0 %403
      %406 = vset.pattern.permute.xlu0 2
      %407 = vperm.xlu0 %406, %v275
      %v408 = vpop.permute.xlu0 %407
      %410 = vset.pattern.permute.xlu0 2
      %411 = vperm.xlu0 %410, %v276
      %v412 = vpop.permute.xlu0 %411
      %v414 = vlaneseq
      %v415 = vshrl.u32 %v414, 7
      %v416 = vsub.s32 2, %v415
      %v417 = vrot.slane %v277, %v416
      %v418 = vmul.f32 %v384, %v417
      %v419 = vmul.f32 %v388, %v417
      %v420 = vmul.f32 %v392, %v417
      %v421 = vmul.f32 %v396, %v417
      %v422 = vmul.f32 %v400, %v417
      %v423 = vmul.f32 %v404, %v417
      %v424 = vmul.f32 %v408, %v417
      %v425 = vmul.f32 %v412, %v417
      %v426 = vadd.f32 %v374, %v418
      %v427 = vadd.f32 %v375, %v419
      %v428 = vadd.f32 %v376, %v420
      %v429 = vadd.f32 %v377, %v421
      %v430 = vadd.f32 %v378, %v422
      %v431 = vadd.f32 %v379, %v423
      %v432 = vadd.f32 %v380, %v424
      %v433 = vadd.f32 %v381, %v425
      %434 = vset.pattern.permute.xlu0 3
      %435 = vperm.xlu0 %434, %v269
      %v436 = vpop.permute.xlu0 %435
      %438 = vset.pattern.permute.xlu0 3
      %439 = vperm.xlu0 %438, %v270
      %v440 = vpop.permute.xlu0 %439
      %442 = vset.pattern.permute.xlu0 3
      %443 = vperm.xlu0 %442, %v271
      %v444 = vpop.permute.xlu0 %443
      %446 = vset.pattern.permute.xlu0 3
      %447 = vperm.xlu0 %446, %v272
      %v448 = vpop.permute.xlu0 %447
      %450 = vset.pattern.permute.xlu0 3
      %451 = vperm.xlu0 %450, %v273
      %v452 = vpop.permute.xlu0 %451
      %454 = vset.pattern.permute.xlu0 3
      %455 = vperm.xlu0 %454, %v274
      %v456 = vpop.permute.xlu0 %455
      %458 = vset.pattern.permute.xlu0 3
      %459 = vperm.xlu0 %458, %v275
      %v460 = vpop.permute.xlu0 %459
      %462 = vset.pattern.permute.xlu0 3
      %463 = vperm.xlu0 %462, %v276
      %v464 = vpop.permute.xlu0 %463
      %v466 = vlaneseq
      %v467 = vshrl.u32 %v466, 7
      %v468 = vsub.s32 3, %v467
      %v469 = vrot.slane %v277, %v468
      %v470 = vmul.f32 %v436, %v469
      %v471 = vmul.f32 %v440, %v469
      %v472 = vmul.f32 %v444, %v469
      %v473 = vmul.f32 %v448, %v469
      %v474 = vmul.f32 %v452, %v469
      %v475 = vmul.f32 %v456, %v469
      %v476 = vmul.f32 %v460, %v469
      %v477 = vmul.f32 %v464, %v469
      %v478 = vadd.f32 %v426, %v470
      %v479 = vadd.f32 %v427, %v471
      %v480 = vadd.f32 %v428, %v472
      %v481 = vadd.f32 %v429, %v473
      %v482 = vadd.f32 %v430, %v474
      %v483 = vadd.f32 %v431, %v475
      %v484 = vadd.f32 %v432, %v476
      %v485 = vadd.f32 %v433, %v477
      %486 = vset.pattern.permute.xlu0 4
      %487 = vperm.xlu0 %486, %v269
      %v488 = vpop.permute.xlu0 %487
      %490 = vset.pattern.permute.xlu0 4
      %491 = vperm.xlu0 %490, %v270
      %v492 = vpop.permute.xlu0 %491
      %494 = vset.pattern.permute.xlu0 4
      %495 = vperm.xlu0 %494, %v271
      %v496 = vpop.permute.xlu0 %495
      %498 = vset.pattern.permute.xlu0 4
      %499 = vperm.xlu0 %498, %v272
      %v500 = vpop.permute.xlu0 %499
      %502 = vset.pattern.permute.xlu0 4
      %503 = vperm.xlu0 %502, %v273
      %v504 = vpop.permute.xlu0 %503
      %506 = vset.pattern.permute.xlu0 4
      %507 = vperm.xlu0 %506, %v274
      %v508 = vpop.permute.xlu0 %507
      %510 = vset.pattern.permute.xlu0 4
      %511 = vperm.xlu0 %510, %v275
      %v512 = vpop.permute.xlu0 %511
      %514 = vset.pattern.permute.xlu0 4
      %515 = vperm.xlu0 %514, %v276
      %v516 = vpop.permute.xlu0 %515
      %v518 = vlaneseq
      %v519 = vshrl.u32 %v518, 7
      %v520 = vsub.s32 4, %v519
      %v521 = vrot.slane %v277, %v520
      %v522 = vmul.f32 %v488, %v521
      %v523 = vmul.f32 %v492, %v521
      %v524 = vmul.f32 %v496, %v521
      %v525 = vmul.f32 %v500, %v521
      %v526 = vmul.f32 %v504, %v521
      %v527 = vmul.f32 %v508, %v521
      %v528 = vmul.f32 %v512, %v521
      %v529 = vmul.f32 %v516, %v521
      %v530 = vadd.f32 %v478, %v522
      %v531 = vadd.f32 %v479, %v523
      %v532 = vadd.f32 %v480, %v524
      %v533 = vadd.f32 %v481, %v525
      %v534 = vadd.f32 %v482, %v526
      %v535 = vadd.f32 %v483, %v527
      %v536 = vadd.f32 %v484, %v528
      %v537 = vadd.f32 %v485, %v529
      %538 = vset.pattern.permute.xlu0 5
      %539 = vperm.xlu0 %538, %v269
      %v540 = vpop.permute.xlu0 %539
      %542 = vset.pattern.permute.xlu0 5
      %543 = vperm.xlu0 %542, %v270
      %v544 = vpop.permute.xlu0 %543
      %546 = vset.pattern.permute.xlu0 5
      %547 = vperm.xlu0 %546, %v271
      %v548 = vpop.permute.xlu0 %547
      %550 = vset.pattern.permute.xlu0 5
      %551 = vperm.xlu0 %550, %v272
      %v552 = vpop.permute.xlu0 %551
      %554 = vset.pattern.permute.xlu0 5
      %555 = vperm.xlu0 %554, %v273
      %v556 = vpop.permute.xlu0 %555
      %558 = vset.pattern.permute.xlu0 5
      %559 = vperm.xlu0 %558, %v274
      %v560 = vpop.permute.xlu0 %559
      %562 = vset.pattern.permute.xlu0 5
      %563 = vperm.xlu0 %562, %v275
      %v564 = vpop.permute.xlu0 %563
      %566 = vset.pattern.permute.xlu0 5
      %567 = vperm.xlu0 %566, %v276
      %v568 = vpop.permute.xlu0 %567
      %v570 = vlaneseq
      %v571 = vshrl.u32 %v570, 7
      %v572 = vsub.s32 5, %v571
      %v573 = vrot.slane %v277, %v572
      %v574 = vmul.f32 %v540, %v573
      %v575 = vmul.f32 %v544, %v573
      %v576 = vmul.f32 %v548, %v573
      %v577 = vmul.f32 %v552, %v573
      %v578 = vmul.f32 %v556, %v573
      %v579 = vmul.f32 %v560, %v573
      %v580 = vmul.f32 %v564, %v573
      %v581 = vmul.f32 %v568, %v573
      %v582 = vadd.f32 %v530, %v574
      %v583 = vadd.f32 %v531, %v575
      %v584 = vadd.f32 %v532, %v576
      %v585 = vadd.f32 %v533, %v577
      %v586 = vadd.f32 %v534, %v578
      %v587 = vadd.f32 %v535, %v579
      %v588 = vadd.f32 %v536, %v580
      %v589 = vadd.f32 %v537, %v581
      %v590 = vld [vmem:[%s2] sm:$0x1]
      %v592 = vlaneseq
      %v593 = vshrl.u32 %v592, 7
      %v594 = vsub.s32 0, %v593
      %v595 = vrot.slane %v590, %v594
      %v597 = vadd.f32 %v582, %v595
      %v598 = vadd.f32 %v583, %v595
      %v599 = vadd.f32 %v584, %v595
      %v600 = vadd.f32 %v585, %v595
      %v601 = vadd.f32 %v586, %v595
      %v602 = vadd.f32 %v587, %v595
      %v603 = vadd.f32 %v588, %v595
      %v604 = vadd.f32 %v589, %v595
      %v605 = vld [vmem:[%s3] sm:$0xff]
      %607 = vset.pattern.permute.xlu0 0
      %608 = vperm.xlu0 %607, %v597
      %v609 = vpop.permute.xlu0 %608
      %612 = vset.pattern.permute.xlu0 0
      %613 = vperm.xlu0 %612, %v598
      %v614 = vpop.permute.xlu0 %613
      %617 = vset.pattern.permute.xlu0 0
      %618 = vperm.xlu0 %617, %v599
      %v619 = vpop.permute.xlu0 %618
      %622 = vset.pattern.permute.xlu0 0
      %623 = vperm.xlu0 %622, %v600
      %v624 = vpop.permute.xlu0 %623
      %627 = vset.pattern.permute.xlu0 0
      %628 = vperm.xlu0 %627, %v601
      %v629 = vpop.permute.xlu0 %628
      %632 = vset.pattern.permute.xlu0 0
      %633 = vperm.xlu0 %632, %v602
      %v634 = vpop.permute.xlu0 %633
      %637 = vset.pattern.permute.xlu0 0
      %638 = vperm.xlu0 %637, %v603
      %v639 = vpop.permute.xlu0 %638
      %642 = vset.pattern.permute.xlu0 0
      %643 = vperm.xlu0 %642, %v604
      %v644 = vpop.permute.xlu0 %643
      %v646 = vlaneseq
      %v647 = vshrl.u32 %v646, 7
      %v648 = vsub.s32 0, %v647
      %v649 = vrot.slane %v605, %v648
      %v650 = vmul.f32 %v609, %v649
      %v651 = vmul.f32 %v614, %v649
      %v652 = vmul.f32 %v619, %v649
      %v653 = vmul.f32 %v624, %v649
      %v654 = vmul.f32 %v629, %v649
      %v655 = vmul.f32 %v634, %v649
      %v656 = vmul.f32 %v639, %v649
      %v657 = vmul.f32 %v644, %v649
      %658 = vset.pattern.permute.xlu0 1
      %659 = vperm.xlu0 %658, %v597
      %v660 = vpop.permute.xlu0 %659
      %662 = vset.pattern.permute.xlu0 1
      %663 = vperm.xlu0 %662, %v598
      %v664 = vpop.permute.xlu0 %663
      %666 = vset.pattern.permute.xlu0 1
      %667 = vperm.xlu0 %666, %v599
      %v668 = vpop.permute.xlu0 %667
      %670 = vset.pattern.permute.xlu0 1
      %671 = vperm.xlu0 %670, %v600
      %v672 = vpop.permute.xlu0 %671
      %674 = vset.pattern.permute.xlu0 1
      %675 = vperm.xlu0 %674, %v601
      %v676 = vpop.permute.xlu0 %675
      %678 = vset.pattern.permute.xlu0 1
      %679 = vperm.xlu0 %678, %v602
      %v680 = vpop.permute.xlu0 %679
      %682 = vset.pattern.permute.xlu0 1
      %683 = vperm.xlu0 %682, %v603
      %v684 = vpop.permute.xlu0 %683
      %686 = vset.pattern.permute.xlu0 1
      %687 = vperm.xlu0 %686, %v604
      %v688 = vpop.permute.xlu0 %687
      %v690 = vlaneseq
      %v691 = vshrl.u32 %v690, 7
      %v692 = vsub.s32 1, %v691
      %v693 = vrot.slane %v605, %v692
      %v694 = vmul.f32 %v660, %v693
      %v695 = vmul.f32 %v664, %v693
      %v696 = vmul.f32 %v668, %v693
      %v697 = vmul.f32 %v672, %v693
      %v698 = vmul.f32 %v676, %v693
      %v699 = vmul.f32 %v680, %v693
      %v700 = vmul.f32 %v684, %v693
      %v701 = vmul.f32 %v688, %v693
      %v702 = vadd.f32 %v650, %v694
      %v703 = vadd.f32 %v651, %v695
      %v704 = vadd.f32 %v652, %v696
      %v705 = vadd.f32 %v653, %v697
      %v706 = vadd.f32 %v654, %v698
      %v707 = vadd.f32 %v655, %v699
      %v708 = vadd.f32 %v656, %v700
      %v709 = vadd.f32 %v657, %v701
      %710 = vset.pattern.permute.xlu0 2
      %711 = vperm.xlu0 %710, %v597
      %v712 = vpop.permute.xlu0 %711
      %714 = vset.pattern.permute.xlu0 2
      %715 = vperm.xlu0 %714, %v598
      %v716 = vpop.permute.xlu0 %715
      %718 = vset.pattern.permute.xlu0 2
      %719 = vperm.xlu0 %718, %v599
      %v720 = vpop.permute.xlu0 %719
      %722 = vset.pattern.permute.xlu0 2
      %723 = vperm.xlu0 %722, %v600
      %v724 = vpop.permute.xlu0 %723
      %726 = vset.pattern.permute.xlu0 2
      %727 = vperm.xlu0 %726, %v601
      %v728 = vpop.permute.xlu0 %727
      %730 = vset.pattern.permute.xlu0 2
      %731 = vperm.xlu0 %730, %v602
      %v732 = vpop.permute.xlu0 %731
      %734 = vset.pattern.permute.xlu0 2
      %735 = vperm.xlu0 %734, %v603
      %v736 = vpop.permute.xlu0 %735
      %738 = vset.pattern.permute.xlu0 2
      %739 = vperm.xlu0 %738, %v604
      %v740 = vpop.permute.xlu0 %739
      %v742 = vlaneseq
      %v743 = vshrl.u32 %v742, 7
      %v744 = vsub.s32 2, %v743
      %v745 = vrot.slane %v605, %v744
      %v746 = vmul.f32 %v712, %v745
      %v747 = vmul.f32 %v716, %v745
      %v748 = vmul.f32 %v720, %v745
      %v749 = vmul.f32 %v724, %v745
      %v750 = vmul.f32 %v728, %v745
      %v751 = vmul.f32 %v732, %v745
      %v752 = vmul.f32 %v736, %v745
      %v753 = vmul.f32 %v740, %v745
      %v754 = vadd.f32 %v702, %v746
      %v755 = vadd.f32 %v703, %v747
      %v756 = vadd.f32 %v704, %v748
      %v757 = vadd.f32 %v705, %v749
      %v758 = vadd.f32 %v706, %v750
      %v759 = vadd.f32 %v707, %v751
      %v760 = vadd.f32 %v708, %v752
      %v761 = vadd.f32 %v709, %v753
      %762 = vset.pattern.permute.xlu0 3
      %763 = vperm.xlu0 %762, %v597
      %v764 = vpop.permute.xlu0 %763
      %766 = vset.pattern.permute.xlu0 3
      %767 = vperm.xlu0 %766, %v598
      %v768 = vpop.permute.xlu0 %767
      %770 = vset.pattern.permute.xlu0 3
      %771 = vperm.xlu0 %770, %v599
      %v772 = vpop.permute.xlu0 %771
      %774 = vset.pattern.permute.xlu0 3
      %775 = vperm.xlu0 %774, %v600
      %v776 = vpop.permute.xlu0 %775
      %778 = vset.pattern.permute.xlu0 3
      %779 = vperm.xlu0 %778, %v601
      %v780 = vpop.permute.xlu0 %779
      %782 = vset.pattern.permute.xlu0 3
      %783 = vperm.xlu0 %782, %v602
      %v784 = vpop.permute.xlu0 %783
      %786 = vset.pattern.permute.xlu0 3
      %787 = vperm.xlu0 %786, %v603
      %v788 = vpop.permute.xlu0 %787
      %790 = vset.pattern.permute.xlu0 3
      %791 = vperm.xlu0 %790, %v604
      %v792 = vpop.permute.xlu0 %791
      %v794 = vlaneseq
      %v795 = vshrl.u32 %v794, 7
      %v796 = vsub.s32 3, %v795
      %v797 = vrot.slane %v605, %v796
      %v798 = vmul.f32 %v764, %v797
      %v799 = vmul.f32 %v768, %v797
      %v800 = vmul.f32 %v772, %v797
      %v801 = vmul.f32 %v776, %v797
      %v802 = vmul.f32 %v780, %v797
      %v803 = vmul.f32 %v784, %v797
      %v804 = vmul.f32 %v788, %v797
      %v805 = vmul.f32 %v792, %v797
      %v806 = vadd.f32 %v754, %v798
      %v807 = vadd.f32 %v755, %v799
      %v808 = vadd.f32 %v756, %v800
      %v809 = vadd.f32 %v757, %v801
      %v810 = vadd.f32 %v758, %v802
      %v811 = vadd.f32 %v759, %v803
      %v812 = vadd.f32 %v760, %v804
      %v813 = vadd.f32 %v761, %v805
      %814 = vset.pattern.permute.xlu0 4
      %815 = vperm.xlu0 %814, %v597
      %v816 = vpop.permute.xlu0 %815
      %818 = vset.pattern.permute.xlu0 4
      %819 = vperm.xlu0 %818, %v598
      %v820 = vpop.permute.xlu0 %819
      %822 = vset.pattern.permute.xlu0 4
      %823 = vperm.xlu0 %822, %v599
      %v824 = vpop.permute.xlu0 %823
      %826 = vset.pattern.permute.xlu0 4
      %827 = vperm.xlu0 %826, %v600
      %v828 = vpop.permute.xlu0 %827
      %830 = vset.pattern.permute.xlu0 4
      %831 = vperm.xlu0 %830, %v601
      %v832 = vpop.permute.xlu0 %831
      %834 = vset.pattern.permute.xlu0 4
      %835 = vperm.xlu0 %834, %v602
      %v836 = vpop.permute.xlu0 %835
      %838 = vset.pattern.permute.xlu0 4
      %839 = vperm.xlu0 %838, %v603
      %v840 = vpop.permute.xlu0 %839
      %842 = vset.pattern.permute.xlu0 4
      %843 = vperm.xlu0 %842, %v604
      %v844 = vpop.permute.xlu0 %843
      %v846 = vlaneseq
      %v847 = vshrl.u32 %v846, 7
      %v848 = vsub.s32 4, %v847
      %v849 = vrot.slane %v605, %v848
      %v850 = vmul.f32 %v816, %v849
      %v851 = vmul.f32 %v820, %v849
      %v852 = vmul.f32 %v824, %v849
      %v853 = vmul.f32 %v828, %v849
      %v854 = vmul.f32 %v832, %v849
      %v855 = vmul.f32 %v836, %v849
      %v856 = vmul.f32 %v840, %v849
      %v857 = vmul.f32 %v844, %v849
      %v858 = vadd.f32 %v806, %v850
      %v859 = vadd.f32 %v807, %v851
      %v860 = vadd.f32 %v808, %v852
      %v861 = vadd.f32 %v809, %v853
      %v862 = vadd.f32 %v810, %v854
      %v863 = vadd.f32 %v811, %v855
      %v864 = vadd.f32 %v812, %v856
      %v865 = vadd.f32 %v813, %v857
      %866 = vset.pattern.permute.xlu0 5
      %867 = vperm.xlu0 %866, %v597
      %v868 = vpop.permute.xlu0 %867
      %870 = vset.pattern.permute.xlu0 5
      %871 = vperm.xlu0 %870, %v598
      %v872 = vpop.permute.xlu0 %871
      %874 = vset.pattern.permute.xlu0 5
      %875 = vperm.xlu0 %874, %v599
      %v876 = vpop.permute.xlu0 %875
      %878 = vset.pattern.permute.xlu0 5
      %879 = vperm.xlu0 %878, %v600
      %v880 = vpop.permute.xlu0 %879
      %882 = vset.pattern.permute.xlu0 5
      %883 = vperm.xlu0 %882, %v601
      %v884 = vpop.permute.xlu0 %883
      %886 = vset.pattern.permute.xlu0 5
      %887 = vperm.xlu0 %886, %v602
      %v888 = vpop.permute.xlu0 %887
      %890 = vset.pattern.permute.xlu0 5
      %891 = vperm.xlu0 %890, %v603
      %v892 = vpop.permute.xlu0 %891
      %894 = vset.pattern.permute.xlu0 5
      %895 = vperm.xlu0 %894, %v604
      %v896 = vpop.permute.xlu0 %895
      %v898 = vlaneseq
      %v899 = vshrl.u32 %v898, 7
      %v900 = vsub.s32 5, %v899
      %v901 = vrot.slane %v605, %v900
      %v902 = vmul.f32 %v868, %v901
      %v903 = vmul.f32 %v872, %v901
      %v904 = vmul.f32 %v876, %v901
      %v905 = vmul.f32 %v880, %v901
      %v906 = vmul.f32 %v884, %v901
      %v907 = vmul.f32 %v888, %v901
      %v908 = vmul.f32 %v892, %v901
      %v909 = vmul.f32 %v896, %v901
      %v910 = vadd.f32 %v858, %v902
      %v911 = vadd.f32 %v859, %v903
      %v912 = vadd.f32 %v860, %v904
      %v913 = vadd.f32 %v861, %v905
      %v914 = vadd.f32 %v862, %v906
      %v915 = vadd.f32 %v863, %v907
      %v916 = vadd.f32 %v864, %v908
      %v917 = vadd.f32 %v865, %v909
      %918 = vset.pattern.permute.xlu0 6
      %919 = vperm.xlu0 %918, %v597
      %v920 = vpop.permute.xlu0 %919
      %922 = vset.pattern.permute.xlu0 6
      %923 = vperm.xlu0 %922, %v598
      %v924 = vpop.permute.xlu0 %923
      %926 = vset.pattern.permute.xlu0 6
      %927 = vperm.xlu0 %926, %v599
      %v928 = vpop.permute.xlu0 %927
      %930 = vset.pattern.permute.xlu0 6
      %931 = vperm.xlu0 %930, %v600
      %v932 = vpop.permute.xlu0 %931
      %934 = vset.pattern.permute.xlu0 6
      %935 = vperm.xlu0 %934, %v601
      %v936 = vpop.permute.xlu0 %935
      %938 = vset.pattern.permute.xlu0 6
      %939 = vperm.xlu0 %938, %v602
      %v940 = vpop.permute.xlu0 %939
      %942 = vset.pattern.permute.xlu0 6
      %943 = vperm.xlu0 %942, %v603
      %v944 = vpop.permute.xlu0 %943
      %946 = vset.pattern.permute.xlu0 6
      %947 = vperm.xlu0 %946, %v604
      %v948 = vpop.permute.xlu0 %947
      %v950 = vlaneseq
      %v951 = vshrl.u32 %v950, 7
      %v952 = vsub.s32 6, %v951
      %v953 = vrot.slane %v605, %v952
      %v954 = vmul.f32 %v920, %v953
      %v955 = vmul.f32 %v924, %v953
      %v956 = vmul.f32 %v928, %v953
      %v957 = vmul.f32 %v932, %v953
      %v958 = vmul.f32 %v936, %v953
      %v959 = vmul.f32 %v940, %v953
      %v960 = vmul.f32 %v944, %v953
      %v961 = vmul.f32 %v948, %v953
      %v962 = vadd.f32 %v910, %v954
      %v963 = vadd.f32 %v911, %v955
      %v964 = vadd.f32 %v912, %v956
      %v965 = vadd.f32 %v913, %v957
      %v966 = vadd.f32 %v914, %v958
      %v967 = vadd.f32 %v915, %v959
      %v968 = vadd.f32 %v916, %v960
      %v969 = vadd.f32 %v917, %v961
      %970 = vset.pattern.permute.xlu0 7
      %971 = vperm.xlu0 %970, %v597
      %v972 = vpop.permute.xlu0 %971
      %974 = vset.pattern.permute.xlu0 7
      %975 = vperm.xlu0 %974, %v598
      %v976 = vpop.permute.xlu0 %975
      %978 = vset.pattern.permute.xlu0 7
      %979 = vperm.xlu0 %978, %v599
      %v980 = vpop.permute.xlu0 %979
      %982 = vset.pattern.permute.xlu0 7
      %983 = vperm.xlu0 %982, %v600
      %v984 = vpop.permute.xlu0 %983
      %986 = vset.pattern.permute.xlu0 7
      %987 = vperm.xlu0 %986, %v601
      %v988 = vpop.permute.xlu0 %987
      %990 = vset.pattern.permute.xlu0 7
      %991 = vperm.xlu0 %990, %v602
      %v992 = vpop.permute.xlu0 %991
      %994 = vset.pattern.permute.xlu0 7
      %995 = vperm.xlu0 %994, %v603
      %v996 = vpop.permute.xlu0 %995
      %998 = vset.pattern.permute.xlu0 7
      %999 = vperm.xlu0 %998, %v604
      %v1000 = vpop.permute.xlu0 %999
      %v1002 = vlaneseq
      %v1003 = vshrl.u32 %v1002, 7
      %v1004 = vsub.s32 7, %v1003
      %v1005 = vrot.slane %v605, %v1004
      %v1006 = vmul.f32 %v972, %v1005
      %v1007 = vmul.f32 %v976, %v1005
      %v1008 = vmul.f32 %v980, %v1005
      %v1009 = vmul.f32 %v984, %v1005
      %v1010 = vmul.f32 %v988, %v1005
      %v1011 = vmul.f32 %v992, %v1005
      %v1012 = vmul.f32 %v996, %v1005
      %v1013 = vmul.f32 %v1000, %v1005
      %v1014 = vadd.f32 %v962, %v1006
      %v1015 = vadd.f32 %v963, %v1007
      %v1016 = vadd.f32 %v964, %v1008
      %v1017 = vadd.f32 %v965, %v1009
      %v1018 = vadd.f32 %v966, %v1010
      %v1019 = vadd.f32 %v967, %v1011
      %v1020 = vadd.f32 %v968, %v1012
      %v1021 = vadd.f32 %v969, %v1013
      %v1022 = vld [vmem:[%s4] sm:$0x1]
      %v1024 = vlaneseq
      %v1025 = vshrl.u32 %v1024, 7
      %v1026 = vsub.s32 0, %v1025
      %v1027 = vrot.slane %v1022, %v1026
      %v1029 = vadd.f32 %v1014, %v1027
      %v1030 = vadd.f32 %v1015, %v1027
      %v1031 = vadd.f32 %v1016, %v1027
      %v1032 = vadd.f32 %v1017, %v1027
      %v1033 = vadd.f32 %v1018, %v1027
      %v1034 = vadd.f32 %v1019, %v1027
      %v1035 = vadd.f32 %v1020, %v1027
      %v1036 = vadd.f32 %v1021, %v1027
      %vm1037 = vcmask 261120
      %1038 = vst.msk [vmem:[%s267] sm:$0xff] %vm1037, %v1029
      %1039 = vst.msk [vmem:[%s267 + $0x8] sm:$0xff] %vm1037, %v1030
      %1040 = vst.msk [vmem:[%s267 + $0x10] sm:$0xff] %vm1037, %v1031
      %1041 = vst.msk [vmem:[%s267 + $0x18] sm:$0xff] %vm1037, %v1032
      %1042 = vst.msk [vmem:[%s267 + $0x20] sm:$0xff] %vm1037, %v1033
      %1043 = vst.msk [vmem:[%s267 + $0x28] sm:$0xff] %vm1037, %v1034
      %1044 = vst.msk [vmem:[%s267 + $0x30] sm:$0xff] %vm1037, %v1035
      %1045 = vst.msk [vmem:[%s267 + $0x38] sm:$0xff] %vm1037, %v1036
      %vm1046 = vcmp.ge.f32.partialorder %v1029, 0.0
      %vm1047 = vcmp.ge.f32.partialorder %v1030, 0.0
      %vm1048 = vcmp.ge.f32.partialorder %v1031, 0.0
      %vm1049 = vcmp.ge.f32.partialorder %v1032, 0.0
      %vm1050 = vcmp.ge.f32.partialorder %v1033, 0.0
      %vm1051 = vcmp.ge.f32.partialorder %v1034, 0.0
      %vm1052 = vcmp.ge.f32.partialorder %v1035, 0.0
      %vm1053 = vcmp.ge.f32.partialorder %v1036, 0.0
      %v1054 = vmul.f32 %v1029, 0.2
      %v1055 = vmul.f32 %v1030, 0.2
      %v1056 = vmul.f32 %v1031, 0.2
      %v1057 = vmul.f32 %v1032, 0.2
      %v1058 = vmul.f32 %v1033, 0.2
      %v1059 = vmul.f32 %v1034, 0.2
      %v1060 = vmul.f32 %v1035, 0.2
      %v1061 = vmul.f32 %v1036, 0.2
      %v1062 = vsel %vm1046, %v1029, %v1054
      %v1063 = vsel %vm1047, %v1030, %v1055
      %v1064 = vsel %vm1048, %v1031, %v1056
      %v1065 = vsel %vm1049, %v1032, %v1057
      %v1066 = vsel %vm1050, %v1033, %v1058
      %v1067 = vsel %vm1051, %v1034, %v1059
      %v1068 = vsel %vm1052, %v1035, %v1060
      %v1069 = vsel %vm1053, %v1036, %v1061
      %1078 = vrot.lane.b32.xlu0 %v1062, 96
      %v1079 = vpop.permute.xlu0 %1078
      %1080 = vrot.lane.b32.xlu0 %v1063, 96
      %v1081 = vpop.permute.xlu0 %1080
      %1082 = vrot.lane.b32.xlu0 %v1064, 96
      %v1083 = vpop.permute.xlu0 %1082
      %1084 = vrot.lane.b32.xlu0 %v1065, 96
      %v1085 = vpop.permute.xlu0 %1084
      %1086 = vrot.lane.b32.xlu0 %v1066, 96
      %v1087 = vpop.permute.xlu0 %1086
      %1088 = vrot.lane.b32.xlu0 %v1067, 96
      %v1089 = vpop.permute.xlu0 %1088
      %1090 = vrot.lane.b32.xlu0 %v1068, 96
      %v1091 = vpop.permute.xlu0 %1090
      %1092 = vrot.lane.b32.xlu0 %v1069, 96
      %v1093 = vpop.permute.xlu0 %1092
      %vm1102 = vcmask 31744
      %1103 = vst.msk [vmem:[%s261] sm:$0xff] %vm1102, %v1079
      %1104 = vst.msk [vmem:[%s261 + $0x8] sm:$0xff] %vm1102, %v1081
      %1105 = vst.msk [vmem:[%s261 + $0x10] sm:$0xff] %vm1102, %v1083
      %1106 = vst.msk [vmem:[%s261 + $0x18] sm:$0xff] %vm1102, %v1085
      %1107 = vst.msk [vmem:[%s261 + $0x20] sm:$0xff] %vm1102, %v1087
      %1108 = vst.msk [vmem:[%s261 + $0x28] sm:$0xff] %vm1102, %v1089
      %1109 = vst.msk [vmem:[%s261 + $0x30] sm:$0xff] %vm1102, %v1091
      %1110 = vst.msk [vmem:[%s261 + $0x38] sm:$0xff] %vm1102, %v1093
      %s1111 = smul.u32 8, %s18
      %p1112 = scmp.lt.s32.totalorder %s1111, 15
      %s1113 = scalar_select %p1112, %s1111, 15
      %s1114 = smul.addr %s1113, 8
      %s1115 = scalar_lea.vmem %s5, %s1114
      %s1116 = smul.u32 8, %s18
      %p1117 = scmp.lt.s32.totalorder %s1116, 15
      %s1118 = scalar_select %p1117, %s1116, 15
      %s1119 = smul.addr %s1118, 8
      %s1120 = scalar_lea.vmem %s6, %s1119
      // Predicated region
      $region41: #{tpu_custom_call.1} parent=39 // pred_check
        %p1121 = pneg %p146
      $region42: #{tpu_custom_call.1} parent=39 // pred_check_branch
        %1123 = sbr.rel (%p1121) target = $region44
      $region43: #{tpu_custom_call.1} parent=39 // pred_region
        %s1124 = smul.u32 8, %s18
      $region44: #{tpu_custom_call.1} parent=39 // pred_fallthru
        _
      // Predicated region
      $region45: #{tpu_custom_call.1} parent=39 // pred_check
        %p1125 = pneg %p172
      $region46: #{tpu_custom_call.1} parent=39 // pred_check_branch
        %1127 = sbr.rel (%p1125) target = $region48
      $region47: #{tpu_custom_call.1} parent=39 // pred_region
        %s1128 = smul.u32 8, %s18
      $region48: #{tpu_custom_call.1} parent=39 // pred_fallthru
        _
    $region40: #{tpu_custom_call.1} parent=5 // pred_fallthru
      _
    %p1129 = scmp.le.s32.totalorder 2, %s13
    // Predicated region
    $region49: #{tpu_custom_call.1} parent=5 // pred_check
      %p1130 = pneg %p1129
    $region50: #{tpu_custom_call.1} parent=5 // pred_check_branch
      %1132 = sbr.rel (%p1130) target = $region52
    $region51: #{tpu_custom_call.1} parent=5 // pred_region
      %s1133 = ssub.s32 %s13, 2
      // Predicated region
      $region53: #{tpu_custom_call.1} parent=51 // pred_check
        %p1134 = pneg %p152
      $region54: #{tpu_custom_call.1} parent=51 // pred_check_branch
        %1136 = sbr.rel (%p1134) target = $region56
      $region55: #{tpu_custom_call.1} parent=51 // pred_region
        %s1137 = smul.u32 8, %s19
        %p1138 = scmp.lt.s32.totalorder %s1137, 15
        %s1139 = scalar_select %p1138, %s1137, 15
        %s1140 = smul.addr %s1139, 8
        %s1141 = scalar_lea.vmem %s5, %s1140
      $region56: #{tpu_custom_call.1} parent=51 // pred_fallthru
        _
      // Predicated region
      $region57: #{tpu_custom_call.1} parent=51 // pred_check
        %p1142 = pneg %p178
      $region58: #{tpu_custom_call.1} parent=51 // pred_check_branch
        %1144 = sbr.rel (%p1142) target = $region60
      $region59: #{tpu_custom_call.1} parent=51 // pred_region
        %s1145 = smul.u32 8, %s19
        %p1146 = scmp.lt.s32.totalorder %s1145, 15
        %s1147 = scalar_select %p1146, %s1145, 15
        %s1148 = smul.addr %s1147, 8
        %s1149 = scalar_lea.vmem %s6, %s1148
      $region60: #{tpu_custom_call.1} parent=51 // pred_fallthru
        _
    $region52: #{tpu_custom_call.1} parent=5 // pred_fallthru
      _
  $region6: #{tpu_custom_call.1} parent=0 // loop_footer
    %s17 = sadd.s32 1, %s13
  $region7: #{tpu_custom_call.1} parent=0 // loop_footer_branch
    %12 = sbr.rel target = $region3
  $region8: #{tpu_custom_call.1} parent=0 // loop_exit
    _

</llo_original>
